<compile_context>
chip_gen: v5e
topology: v5e:2x2
jax: 0.10.0
libtpu: 0.0.40
codegen_flags: <defaults>
</compile_context>

<pallas_src>
import functools

import numpy as np
import jax
import jax.numpy as jnp
from jax import lax
from jax.experimental import pallas as pl
from jax.experimental.pallas import tpu as pltpu


def _sum_all_keepdims(x):
    """Full reduction that keeps rank (stays vectorized inside the kernel)."""
    for ax in range(x.ndim - 1, -1, -1):
        x = jnp.sum(x, axis=ax, keepdims=True)
    return x


def _pick_row_tile(H, row_bytes, target_bytes=2 * 1024 * 1024):
    """Largest row tile that (a) is a multiple of 8 dividing H (or == H) and
    (b) keeps one (C, rows, W) f32 block under ~target_bytes."""
    max_rows = max(8, target_bytes // max(1, row_bytes))
    if H <= max_rows:
        return H
    t = min(int(max_rows) - int(max_rows) % 8, H - H % 8)
    while t >= 8:
        if H % t == 0:
            return t
        t -= 8
    return H  # fallback: whole image per step


def _pick_hw_tile(HW, cap=2048):
    """Pixel-tile for MI: full HW if small, else a 128-aligned cap (ragged last
    tile is masked in-kernel)."""
    return HW if HW <= cap else cap


# ----------------------------------------------------------------------------- #
# ZNCC loss — one-pass per-channel moments, row-tile reduction axis
# ----------------------------------------------------------------------------- #
def _zncc_kernel(x1_ref, x2_ref, out_ref,
                 s1_ref, s2_ref, s11_ref, s22_ref, s12_ref,
                 *, return_squared, inv_n):
    t = pl.program_id(1)

    @pl.when(t == 0)
    def _():
        for r in (s1_ref, s2_ref, s11_ref, s22_ref, s12_ref):
            r[...] = jnp.zeros_like(r)

    x1 = x1_ref[0]                        # (C, rows, W): rows on sublanes, W on lanes
    x2 = x2_ref[0]

    def csum(v):                          # per-channel sum over (rows, W) -> (C, 1, 1)
        return jnp.sum(jnp.sum(v, axis=2, keepdims=True), axis=1, keepdims=True)

    s1_ref[...] += csum(x1)
    s2_ref[...] += csum(x2)
    s11_ref[...] += csum(x1 * x1)
    s22_ref[...] += csum(x2 * x2)
    s12_ref[...] += csum(x1 * x2)

    @pl.when(t == pl.num_programs(1) - 1)
    def _():
        s1 = s1_ref[...]
        s2 = s2_ref[...]
        # sum_c sum_hw (x1 - mu1_c)(x2 - mu2_c) = sum_c (S12_c - S1_c*S2_c/N), etc.
        cross = jnp.sum(s12_ref[...] - s1 * s2 * inv_n, axis=0, keepdims=True)
        var1 = jnp.maximum(
            jnp.sum(s11_ref[...] - s1 * s1 * inv_n, axis=0, keepdims=True), 0.0)
        var2 = jnp.maximum(
            jnp.sum(s22_ref[...] - s2 * s2 * inv_n, axis=0, keepdims=True), 0.0)
        z = cross / (jnp.sqrt(var1) * jnp.sqrt(var2) + 1e-8)
        if return_squared:
            z = z * z
        out_ref[...] = z                  # (1, 1, 1)


def zncc_loss(x1, x2, *, return_squared=True, row_tile=None):
    B, C, H, W = x1.shape
    x1 = x1.astype(jnp.float32)
    x2 = x2.astype(jnp.float32)
    if row_tile is None:
        row_tile = _pick_row_tile(H, row_bytes=C * W * 4)
    assert H % row_tile == 0 and (row_tile % 8 == 0 or row_tile == H)
    nt = H // row_tile

    x_spec = pl.BlockSpec((1, C, row_tile, W), lambda b, t: (b, 0, t, 0))
    per_batch = pl.pallas_call(
        functools.partial(_zncc_kernel, return_squared=return_squared,
                          inv_n=1.0 / (H * W)),
        out_shape=jax.ShapeDtypeStruct((B, 1, 1), jnp.float32),
        grid=(B, nt),
        in_specs=[x_spec, x_spec],
        out_specs=pl.BlockSpec((1, 1, 1), lambda b, t: (b, 0, 0)),
        scratch_shapes=[pltpu.VMEM((C, 1, 1), jnp.float32)] * 5,
        compiler_params=pltpu.CompilerParams(
            dimension_semantics=("parallel", "arbitrary"),
            vmem_limit_bytes=32 * 1024 * 1024),
    )(x1, x2)
    return 1.0 - jnp.mean(per_batch.reshape(B))


# ----------------------------------------------------------------------------- #
# Mutual-information loss — pixel-tile reduction, bf16 MXU joint, iota bins
# ----------------------------------------------------------------------------- #
def _mi_kernel(x1_ref, x2_ref, out_ref, joint_ref, p1_ref, p2_ref, *,
               sigma, normalize, epsilon, num_bins, hw_total, hw_tile, mask_last):
    k = pl.program_id(1)

    @pl.when(k == 0)
    def _():
        joint_ref[...] = jnp.zeros_like(joint_ref)
        p1_ref[...] = jnp.zeros_like(p1_ref)
        p2_ref[...] = jnp.zeros_like(p2_ref)

    v1 = x1_ref[0] * 255.0                          # (1, hw_tile), lane-dense
    v2 = x2_ref[0] * 255.0
    bin_scale = 255.0 / (num_bins - 1)              # == torch.linspace(0, 255, nb)
    bins = (lax.broadcasted_iota(jnp.int32, (num_bins, 1), 0)
            .astype(jnp.float32) * bin_scale)       # bins on sublanes
    c = -0.5 / (sigma * sigma)                      # folded constant

    d1 = v1 - bins                                  # (num_bins, hw_tile)
    kv1 = jnp.exp(c * (d1 * d1))
    d2 = v2 - bins
    kv2 = jnp.exp(c * (d2 * d2))

    if mask_last:                                   # ragged last pixel tile
        col = k * hw_tile + lax.broadcasted_iota(jnp.int32, (1, hw_tile), 1)
        valid = col < hw_total
        kv1 = jnp.where(valid, kv1, 0.0)
        kv2 = jnp.where(valid, kv2, 0.0)

    p1_ref[...] += jnp.sum(kv1, axis=1, keepdims=True)   # (num_bins, 1)
    p2_ref[...] += jnp.sum(kv2, axis=1, keepdims=True)
    # joint[i, j] = sum_n K(x1_n, bin_i) * K(x2_n, bin_j) — bf16 MXU, f32 acc.
    joint_ref[...] += lax.dot_general(
        kv1.astype(jnp.bfloat16), kv2.astype(jnp.bfloat16),
        (((1,), (1,)), ((), ())),
        preferred_element_type=jnp.float32)

    @pl.when(k == pl.num_programs(1) - 1)
    def _():
        inv_n = 1.0 / hw_total
        pdf1 = p1_ref[...] * inv_n
        pdf1 = pdf1 / (jnp.sum(pdf1, axis=0, keepdims=True) + epsilon)
        pdf2 = p2_ref[...] * inv_n
        pdf2 = pdf2 / (jnp.sum(pdf2, axis=0, keepdims=True) + epsilon)
        joint = joint_ref[...]
        jsum = jnp.sum(jnp.sum(joint, axis=1, keepdims=True), axis=0, keepdims=True)
        joint = joint / (jsum + epsilon)

        h1 = -jnp.sum(pdf1 * jnp.log2(pdf1 + epsilon), axis=0, keepdims=True)   # (1,1)
        h2 = -jnp.sum(pdf2 * jnp.log2(pdf2 + epsilon), axis=0, keepdims=True)
        h12 = -jnp.sum(jnp.sum(joint * jnp.log2(joint + epsilon),
                               axis=1, keepdims=True),
                       axis=0, keepdims=True)
        mi = h1 + h2 - h12
        if normalize:
            mi = mi / (h1 + h2)
        out_ref[0] = mi


def mutual_information_loss(x1, x2, *, sigma=0.1, num_bins=256, normalize=True,
                            hw_tile=None):
    B, C, H, W = x1.shape
    assert C == 1, "MI kernel assumes C == 1 (same broadcast requirement as the torch code)"
    HW = H * W
    if hw_tile is None:
        hw_tile = _pick_hw_tile(HW)
    assert hw_tile == HW or hw_tile % 128 == 0
    nk = -(-HW // hw_tile)
    mask_last = (HW % hw_tile) != 0

    xf1 = x1.reshape(B, 1, HW).astype(jnp.float32)
    xf2 = x2.reshape(B, 1, HW).astype(jnp.float32)
    per_batch = pl.pallas_call(
        functools.partial(_mi_kernel, sigma=float(sigma), normalize=normalize,
                          epsilon=1e-10, num_bins=num_bins, hw_total=HW,
                          hw_tile=hw_tile, mask_last=mask_last),
        out_shape=jax.ShapeDtypeStruct((B, 1, 1), jnp.float32),
        grid=(B, nk),
        in_specs=[
            pl.BlockSpec((1, 1, hw_tile), lambda b, k: (b, 0, k)),
            pl.BlockSpec((1, 1, hw_tile), lambda b, k: (b, 0, k)),
        ],
        out_specs=pl.BlockSpec((1, 1, 1), lambda b, k: (b, 0, 0)),
        scratch_shapes=[
            pltpu.VMEM((num_bins, num_bins), jnp.float32),   # joint accumulator
            pltpu.VMEM((num_bins, 1), jnp.float32),          # sum_n K(x1, bins)
            pltpu.VMEM((num_bins, 1), jnp.float32),          # sum_n K(x2, bins)
        ],
        compiler_params=pltpu.CompilerParams(
            dimension_semantics=("parallel", "arbitrary"),
            vmem_limit_bytes=32 * 1024 * 1024),
    )(xf1, xf2)
    return 1.0 - jnp.mean(per_batch.reshape(B))


# ----------------------------------------------------------------------------- #
# Squared-gradient comparison loss (kornia spatial_gradient, mode='diff')
# Row-tiled, replicate boundaries via 1-row halos, SSE accumulated in scratch.
# ----------------------------------------------------------------------------- #
def _sq_grad_kernel(x1_ref, x2_ref, h1t_ref, h1b_ref, h2t_ref, h2b_ref,
                    out_ref, acc_ref, *, use_sq_grads):
    t = pl.program_id(1)

    @pl.when(t == 0)
    def _():
        acc_ref[...] = jnp.zeros_like(acc_ref)

    x1 = x1_ref[0]                       # (C, rows, W)
    x2 = x2_ref[0]
    h1t = h1t_ref[0, 0]                  # (C, 1, W) replicate-clamped halo rows
    h1b = h1b_ref[0, 0]
    h2t = h2t_ref[0, 0]
    h2b = h2b_ref[0, 0]

    def gx_parts(x):
        # d/dx with replicate padding, split edge / interior columns (no pad array).
        w = x.shape[2]
        parts = [0.5 * (x[:, :, 1:2] - x[:, :, 0:1])]                       # col 0
        if w > 2:
            parts.append(0.5 * (x[:, :, 2:] - x[:, :, :-2]))                # interior
        parts.append(0.5 * (x[:, :, w - 1:w] - x[:, :, w - 2:w - 1]))       # col W-1
        return parts

    def gy_parts(x, top, bot):
        # d/dy with replicate padding; cross-tile rows come from the halos.
        rows = x.shape[1]
        if rows == 1:
            return [0.5 * (bot - top)]
        parts = [0.5 * (x[:, 1:2, :] - top)]                                # row 0
        if rows > 2:
            parts.append(0.5 * (x[:, 2:, :] - x[:, :-2, :]))                # interior
        parts.append(0.5 * (bot - x[:, rows - 2:rows - 1, :]))              # last row
        return parts

    def maybe_sq(g):
        return g * g if use_sq_grads else g

    parts1 = gx_parts(x1) + gy_parts(x1, h1t, h1b)
    parts2 = gx_parts(x2) + gy_parts(x2, h2t, h2b)
    sse = jnp.zeros((1, 1, 1), jnp.float32)
    for g1, g2 in zip(parts1, parts2):
        d = maybe_sq(g1) - maybe_sq(g2)
        sse = sse + _sum_all_keepdims(d * d)
    acc_ref[...] += sse

    @pl.when(t == pl.num_programs(1) - 1)
    def _():
        out_ref[...] = acc_ref[...]


def sq_grad_loss(x1, x2, *, use_sq_grads=True, mode="diff", row_tile=None):
    if mode != "diff":
        # TODO(synk): only kornia's 'diff' spatial_gradient mode is implemented (no sobel).
        raise NotImplementedError("Only mode='diff' is implemented in the Pallas kernel.")
    B, C, H, W = x1.shape
    x1 = x1.astype(jnp.float32)
    x2 = x2.astype(jnp.float32)
    if row_tile is None:
        row_tile = _pick_row_tile(H, row_bytes=C * W * 4)
    assert H % row_tile == 0 and (row_tile % 8 == 0 or row_tile == H)
    nt = H // row_tile

    starts = np.arange(nt) * row_tile
    top_idx = np.clip(starts - 1, 0, H - 1)         # row just above each tile (clamped)
    bot_idx = np.clip(starts + row_tile, 0, H - 1)  # row just below each tile (clamped)

    def halo(x, idx):
        # (B, C, nt, W) -> (B, nt, C, 1, W); only 2 rows/tile, tiny HBM cost.
        return jnp.transpose(x[:, :, idx, :], (0, 2, 1, 3))[:, :, :, None, :]

    h1t, h1b = halo(x1, top_idx), halo(x1, bot_idx)
    h2t, h2b = halo(x2, top_idx), halo(x2, bot_idx)

    x_spec = pl.BlockSpec((1, C, row_tile, W), lambda b, t: (b, 0, t, 0))
    h_spec = pl.BlockSpec((1, 1, C, 1, W), lambda b, t: (b, t, 0, 0, 0))
    per_batch = pl.pallas_call(
        functools.partial(_sq_grad_kernel, use_sq_grads=use_sq_grads),
        out_shape=jax.ShapeDtypeStruct((B, 1, 1), jnp.float32),
        grid=(B, nt),
        in_specs=[x_spec, x_spec, h_spec, h_spec, h_spec, h_spec],
        out_specs=pl.BlockSpec((1, 1, 1), lambda b, t: (b, 0, 0)),
        scratch_shapes=[pltpu.VMEM((1, 1, 1), jnp.float32)],
        compiler_params=pltpu.CompilerParams(
            dimension_semantics=("parallel", "arbitrary"),
            vmem_limit_bytes=32 * 1024 * 1024),
    )(x1, x2, h1t, h1b, h2t, h2b)
    total = B * C * 2 * H * W                       # F.mse_loss mean over (B,C,2,H,W)
    return jnp.sum(per_batch) / total


# ----------------------------------------------------------------------------- #
# DescriptorRegularizationLoss dispatcher (mirrors the nn.Module)
# ----------------------------------------------------------------------------- #
class DescriptorRegularizationLoss:
    def __init__(self, type, **kwargs):
        get = lambda k, d: kwargs.get(k, d)
        if type == "zncc":
            self._fn = functools.partial(zncc_loss,
                                         return_squared=get("return_squared", True))
        elif type == "mi":
            self._fn = functools.partial(mutual_information_loss,
                                         sigma=get("sigma", 0.1),
                                         num_bins=get("num_bins", 256),
                                         normalize=get("normalize", True))
        elif type == "sq_grad":
            self._fn = functools.partial(sq_grad_loss,
                                         use_sq_grads=get("use_sq_grads", True),
                                         mode=get("mode", "diff"))
        elif type in ("sift", "rsq_sift"):
            # TODO(synk): kornia SIFTDescriptor (Gaussian weighting, orientation-histogram
            # spatial-bin pooling conv, patch unfold) has no clean Pallas port here.
            raise NotImplementedError("SIFT descriptor losses are not implemented in Pallas.")
        else:
            raise ValueError(f"Unknown descriptor type: {type}")

    def __call__(self, x1, x2):
        return self._fn(x1, x2)


# ----------------------------------------------------------------------------- #
# Pure-JAX references (mirror the torch math) for validation
# ----------------------------------------------------------------------------- #
def _zncc_ref(x1, x2, return_squared=True):
    mu1 = x1.mean(axis=(2, 3), keepdims=True)
    mu2 = x2.mean(axis=(2, 3), keepdims=True)
    z1, z2 = x1 - mu1, x2 - mu2
    dp = jnp.sum(z1 * z2, axis=(1, 2, 3))
    norm = jnp.sqrt(jnp.sum(z1 ** 2, axis=(1, 2, 3))) * jnp.sqrt(jnp.sum(z2 ** 2, axis=(1, 2, 3)))
    z = dp / (norm + 1e-8)
    if return_squared:
        z = z ** 2
    return 1.0 - z.mean()


def _mi_ref(x1, x2, sigma=0.1, num_bins=256, normalize=True):
    eps = 1e-10
    bins = jnp.linspace(0.0, 255.0, num_bins, dtype=jnp.float32)
    B, C, H, W = x1.shape
    v1 = (x1 * 255.0).reshape(B, H * W, C)
    v2 = (x2 * 255.0).reshape(B, H * W, C)
    kv1 = jnp.exp(-0.5 * ((v1 - bins[None, None, :]) / sigma) ** 2)
    kv2 = jnp.exp(-0.5 * ((v2 - bins[None, None, :]) / sigma) ** 2)
    pdf1 = kv1.mean(axis=1)
    pdf1 = pdf1 / (pdf1.sum(axis=1, keepdims=True) + eps)
    pdf2 = kv2.mean(axis=1)
    pdf2 = pdf2 / (pdf2.sum(axis=1, keepdims=True) + eps)
    joint = jnp.einsum("bni,bnj->bij", kv1, kv2)
    joint = joint / (joint.sum(axis=(1, 2), keepdims=True) + eps)
    h1 = -jnp.sum(pdf1 * jnp.log2(pdf1 + eps), axis=1)
    h2 = -jnp.sum(pdf2 * jnp.log2(pdf2 + eps), axis=1)
    h12 = -jnp.sum(joint * jnp.log2(joint + eps), axis=(1, 2))
    mi = h1 + h2 - h12
    if normalize:
        mi = mi / (h1 + h2)
    return 1.0 - mi.mean()


def _sq_grad_ref(x1, x2, use_sq_grads=True):
    def grads(x):
        xp = jnp.pad(x, ((0, 0), (0, 0), (1, 1), (1, 1)), mode="edge")
        gx = 0.5 * (xp[:, :, 1:-1, 2:] - xp[:, :, 1:-1, :-2])
        gy = 0.5 * (xp[:, :, 2:, 1:-1] - xp[:, :, :-2, 1:-1])
        return jnp.stack([gx, gy], axis=2)
    g1, g2 = grads(x1), grads(x2)
    if use_sq_grads:
        g1, g2 = g1 ** 2, g2 ** 2
    return jnp.mean((g1 - g2) ** 2)


if __name__ == "__main__":
    key = jax.random.PRNGKey(0)
    k1, k2, k3, k4 = jax.random.split(key, 4)

    def check(name, out, ref, rtol, atol):
        out = jax.block_until_ready(out)
        ref = jax.block_until_ready(ref)
        if not np.allclose(np.asarray(out), np.asarray(ref), rtol=rtol, atol=atol):
            raise AssertionError(f"{name}: pallas={out} ref={ref}")

    # Round 1: dispatcher with default tiling (single tile per image).
    B, C, H, W = 2, 1, 16, 16
    x1 = jax.random.uniform(k1, (B, C, H, W), dtype=jnp.float32)
    x2 = jax.random.uniform(k2, (B, C, H, W), dtype=jnp.float32)
    check("zncc", DescriptorRegularizationLoss("zncc")(x1, x2), _zncc_ref(x1, x2), 1e-4, 1e-4)
    check("sq_grad", DescriptorRegularizationLoss("sq_grad")(x1, x2), _sq_grad_ref(x1, x2), 1e-4, 1e-5)
    check("mi", DescriptorRegularizationLoss("mi")(x1, x2), _mi_ref(x1, x2), 2e-2, 2e-2)

    # Round 2: forced small tiles to exercise the reduction-axis accumulation
    # paths (multi row-tile, multi pixel-tile with a masked ragged last tile).
    Hb, Wb = 24, 24
    y1 = jax.random.uniform(k3, (2, 2, Hb, Wb), dtype=jnp.float32)
    y2 = jax.random.uniform(k4, (2, 2, Hb, Wb), dtype=jnp.float32)
    m1, m2 = y1[:, :1], y2[:, :1]
    check("zncc_tiled", zncc_loss(y1, y2, row_tile=8), _zncc_ref(y1, y2), 1e-4, 1e-4)
    check("sq_grad_tiled", sq_grad_loss(y1, y2, row_tile=8), _sq_grad_ref(y1, y2), 1e-4, 1e-5)
    check("mi_tiled", mutual_information_loss(m1, m2, hw_tile=128), _mi_ref(m1, m2), 2e-2, 2e-2)

    print("KERNEL_OK")
</pallas_src>

<mosaic_0001>
module attributes {stable_mosaic.version = 11 : i64} {
  func.func @_zncc_kernel(%arg0: i32, %arg1: i32, %arg2: memref<1x1x16x16xf32, #tpu.memory_space<vmem>>, %arg3: memref<1x1x16x16xf32, #tpu.memory_space<vmem>>, %arg4: memref<1x1x1xf32, #tpu.memory_space<vmem>>, %arg5: memref<1x1x1xf32, #tpu.memory_space<vmem>>, %arg6: memref<1x1x1xf32, #tpu.memory_space<vmem>>, %arg7: memref<1x1x1xf32, #tpu.memory_space<vmem>>, %arg8: memref<1x1x1xf32, #tpu.memory_space<vmem>>, %arg9: memref<1x1x1xf32, #tpu.memory_space<vmem>>) attributes {dimension_semantics = [#tpu.dimension_semantics<parallel>, #tpu.dimension_semantics<arbitrary>], iteration_bounds = array<i64: 2, 1>, scalar_prefetch = 0 : i64, scratch_operands = 5 : i64, tpu.core_type = #tpu.core_type<tc>, window_params = [{transform_indices = @transform_0, window_bounds = array<i64: 1, 1, 16, 16>}, {transform_indices = @transform_1, window_bounds = array<i64: 1, 1, 16, 16>}, {transform_indices = @transform_2, window_bounds = array<i64: 1, 1, 1>}]} {
    %c0_i32 = arith.constant 0 : i32
    %0 = arith.cmpi eq, %arg1, %c0_i32 : i32
    %1 = arith.extui %0 : i1 to i32
    %c0_i32_0 = arith.constant 0 : i32
    %2 = arith.cmpi ne, %1, %c0_i32_0 : i32
    scf.if %2 {
      %cst_49 = arith.constant 0.000000e+00 : f32
      %48 = vector.broadcast %cst_49 : f32 to vector<1x1x1xf32>
      %c0_50 = arith.constant 0 : index
      %c0_51 = arith.constant 0 : index
      %c0_52 = arith.constant 0 : index
      %49 = vector.load %arg5[%c0_50, %c0_51, %c0_52] : memref<1x1x1xf32, #tpu.memory_space<vmem>>, vector<1x1x1xf32>
      tpu.vector_store %arg5[%c0_50, %c0_51, %c0_52], %48 {strides = array<i32>} : memref<1x1x1xf32, #tpu.memory_space<vmem>>, vector<1x1x1xf32>,
      %cst_53 = arith.constant 0.000000e+00 : f32
      %50 = vector.broadcast %cst_53 : f32 to vector<1x1x1xf32>
      %c0_54 = arith.constant 0 : index
      %c0_55 = arith.constant 0 : index
      %c0_56 = arith.constant 0 : index
      %51 = vector.load %arg6[%c0_54, %c0_55, %c0_56] : memref<1x1x1xf32, #tpu.memory_space<vmem>>, vector<1x1x1xf32>
      tpu.vector_store %arg6[%c0_54, %c0_55, %c0_56], %50 {strides = array<i32>} : memref<1x1x1xf32, #tpu.memory_space<vmem>>, vector<1x1x1xf32>,
      %cst_57 = arith.constant 0.000000e+00 : f32
      %52 = vector.broadcast %cst_57 : f32 to vector<1x1x1xf32>
      %c0_58 = arith.constant 0 : index
      %c0_59 = arith.constant 0 : index
      %c0_60 = arith.constant 0 : index
      %53 = vector.load %arg7[%c0_58, %c0_59, %c0_60] : memref<1x1x1xf32, #tpu.memory_space<vmem>>, vector<1x1x1xf32>
      tpu.vector_store %arg7[%c0_58, %c0_59, %c0_60], %52 {strides = array<i32>} : memref<1x1x1xf32, #tpu.memory_space<vmem>>, vector<1x1x1xf32>,
      %cst_61 = arith.constant 0.000000e+00 : f32
      %54 = vector.broadcast %cst_61 : f32 to vector<1x1x1xf32>
      %c0_62 = arith.constant 0 : index
      %c0_63 = arith.constant 0 : index
      %c0_64 = arith.constant 0 : index
      %55 = vector.load %arg8[%c0_62, %c0_63, %c0_64] : memref<1x1x1xf32, #tpu.memory_space<vmem>>, vector<1x1x1xf32>
      tpu.vector_store %arg8[%c0_62, %c0_63, %c0_64], %54 {strides = array<i32>} : memref<1x1x1xf32, #tpu.memory_space<vmem>>, vector<1x1x1xf32>,
      %cst_65 = arith.constant 0.000000e+00 : f32
      %56 = vector.broadcast %cst_65 : f32 to vector<1x1x1xf32>
      %c0_66 = arith.constant 0 : index
      %c0_67 = arith.constant 0 : index
      %c0_68 = arith.constant 0 : index
      %57 = vector.load %arg9[%c0_66, %c0_67, %c0_68] : memref<1x1x1xf32, #tpu.memory_space<vmem>>, vector<1x1x1xf32>
      tpu.vector_store %arg9[%c0_66, %c0_67, %c0_68], %56 {strides = array<i32>} : memref<1x1x1xf32, #tpu.memory_space<vmem>>, vector<1x1x1xf32>,
    } else {
    }
    %c0 = arith.constant 0 : index
    %c0_1 = arith.constant 0 : index
    %c0_2 = arith.constant 0 : index
    %c0_3 = arith.constant 0 : index
    %3 = vector.load %arg2[%c0, %c0_1, %c0_2, %c0_3] : memref<1x1x16x16xf32, #tpu.memory_space<vmem>>, vector<1x1x16x16xf32>
    %4 = vector.shape_cast %3 : vector<1x1x16x16xf32> to vector<1x16x16xf32>
    %c0_4 = arith.constant 0 : index
    %c0_5 = arith.constant 0 : index
    %c0_6 = arith.constant 0 : index
    %c0_7 = arith.constant 0 : index
    %5 = vector.load %arg3[%c0_4, %c0_5, %c0_6, %c0_7] : memref<1x1x16x16xf32, #tpu.memory_space<vmem>>, vector<1x1x16x16xf32>
    %6 = vector.shape_cast %5 : vector<1x1x16x16xf32> to vector<1x16x16xf32>
    %c0_8 = arith.constant 0 : index
    %c0_9 = arith.constant 0 : index
    %c0_10 = arith.constant 0 : index
    %7 = vector.load %arg5[%c0_8, %c0_9, %c0_10] : memref<1x1x1xf32, #tpu.memory_space<vmem>>, vector<1x1x1xf32>
    %cst = arith.constant dense<0.000000e+00> : vector<1x16xf32>
    %8 = vector.multi_reduction <add>, %4, %cst [2] : vector<1x16x16xf32> to vector<1x16xf32>
    %9 = vector.shape_cast %8 : vector<1x16xf32> to vector<1x16x1xf32>
    %cst_11 = arith.constant dense<0.000000e+00> : vector<1x1xf32>
    %10 = vector.multi_reduction <add>, %9, %cst_11 [1] : vector<1x16x1xf32> to vector<1x1xf32>
    %11 = vector.shape_cast %10 : vector<1x1xf32> to vector<1x1x1xf32>
    %12 = arith.addf %7, %11 : vector<1x1x1xf32>
    %c0_12 = arith.constant 0 : index
    %c0_13 = arith.constant 0 : index
    %c0_14 = arith.constant 0 : index
    %13 = vector.load %arg5[%c0_12, %c0_13, %c0_14] : memref<1x1x1xf32, #tpu.memory_space<vmem>>, vector<1x1x1xf32>
    tpu.vector_store %arg5[%c0_12, %c0_13, %c0_14], %12 {strides = array<i32>} : memref<1x1x1xf32, #tpu.memory_space<vmem>>, vector<1x1x1xf32>,
    %c0_15 = arith.constant 0 : index
    %c0_16 = arith.constant 0 : index
    %c0_17 = arith.constant 0 : index
    %14 = vector.load %arg6[%c0_15, %c0_16, %c0_17] : memref<1x1x1xf32, #tpu.memory_space<vmem>>, vector<1x1x1xf32>
    %cst_18 = arith.constant dense<0.000000e+00> : vector<1x16xf32>
    %15 = vector.multi_reduction <add>, %6, %cst_18 [2] : vector<1x16x16xf32> to vector<1x16xf32>
    %16 = vector.shape_cast %15 : vector<1x16xf32> to vector<1x16x1xf32>
    %cst_19 = arith.constant dense<0.000000e+00> : vector<1x1xf32>
    %17 = vector.multi_reduction <add>, %16, %cst_19 [1] : vector<1x16x1xf32> to vector<1x1xf32>
    %18 = vector.shape_cast %17 : vector<1x1xf32> to vector<1x1x1xf32>
    %19 = arith.addf %14, %18 : vector<1x1x1xf32>
    %c0_20 = arith.constant 0 : index
    %c0_21 = arith.constant 0 : index
    %c0_22 = arith.constant 0 : index
    %20 = vector.load %arg6[%c0_20, %c0_21, %c0_22] : memref<1x1x1xf32, #tpu.memory_space<vmem>>, vector<1x1x1xf32>
    tpu.vector_store %arg6[%c0_20, %c0_21, %c0_22], %19 {strides = array<i32>} : memref<1x1x1xf32, #tpu.memory_space<vmem>>, vector<1x1x1xf32>,
    %c0_23 = arith.constant 0 : index
    %c0_24 = arith.constant 0 : index
    %c0_25 = arith.constant 0 : index
    %21 = vector.load %arg7[%c0_23, %c0_24, %c0_25] : memref<1x1x1xf32, #tpu.memory_space<vmem>>, vector<1x1x1xf32>
    %22 = arith.mulf %4, %4 : vector<1x16x16xf32>
    %cst_26 = arith.constant dense<0.000000e+00> : vector<1x16xf32>
    %23 = vector.multi_reduction <add>, %22, %cst_26 [2] : vector<1x16x16xf32> to vector<1x16xf32>
    %24 = vector.shape_cast %23 : vector<1x16xf32> to vector<1x16x1xf32>
    %cst_27 = arith.constant dense<0.000000e+00> : vector<1x1xf32>
    %25 = vector.multi_reduction <add>, %24, %cst_27 [1] : vector<1x16x1xf32> to vector<1x1xf32>
    %26 = vector.shape_cast %25 : vector<1x1xf32> to vector<1x1x1xf32>
    %27 = arith.addf %21, %26 : vector<1x1x1xf32>
    %c0_28 = arith.constant 0 : index
    %c0_29 = arith.constant 0 : index
    %c0_30 = arith.constant 0 : index
    %28 = vector.load %arg7[%c0_28, %c0_29, %c0_30] : memref<1x1x1xf32, #tpu.memory_space<vmem>>, vector<1x1x1xf32>
    tpu.vector_store %arg7[%c0_28, %c0_29, %c0_30], %27 {strides = array<i32>} : memref<1x1x1xf32, #tpu.memory_space<vmem>>, vector<1x1x1xf32>,
    %c0_31 = arith.constant 0 : index
    %c0_32 = arith.constant 0 : index
    %c0_33 = arith.constant 0 : index
    %29 = vector.load %arg8[%c0_31, %c0_32, %c0_33] : memref<1x1x1xf32, #tpu.memory_space<vmem>>, vector<1x1x1xf32>
    %30 = arith.mulf %6, %6 : vector<1x16x16xf32>
    %cst_34 = arith.constant dense<0.000000e+00> : vector<1x16xf32>
    %31 = vector.multi_reduction <add>, %30, %cst_34 [2] : vector<1x16x16xf32> to vector<1x16xf32>
    %32 = vector.shape_cast %31 : vector<1x16xf32> to vector<1x16x1xf32>
    %cst_35 = arith.constant dense<0.000000e+00> : vector<1x1xf32>
    %33 = vector.multi_reduction <add>, %32, %cst_35 [1] : vector<1x16x1xf32> to vector<1x1xf32>
    %34 = vector.shape_cast %33 : vector<1x1xf32> to vector<1x1x1xf32>
    %35 = arith.addf %29, %34 : vector<1x1x1xf32>
    %c0_36 = arith.constant 0 : index
    %c0_37 = arith.constant 0 : index
    %c0_38 = arith.constant 0 : index
    %36 = vector.load %arg8[%c0_36, %c0_37, %c0_38] : memref<1x1x1xf32, #tpu.memory_space<vmem>>, vector<1x1x1xf32>
    tpu.vector_store %arg8[%c0_36, %c0_37, %c0_38], %35 {strides = array<i32>} : memref<1x1x1xf32, #tpu.memory_space<vmem>>, vector<1x1x1xf32>,
    %c0_39 = arith.constant 0 : index
    %c0_40 = arith.constant 0 : index
    %c0_41 = arith.constant 0 : index
    %37 = vector.load %arg9[%c0_39, %c0_40, %c0_41] : memref<1x1x1xf32, #tpu.memory_space<vmem>>, vector<1x1x1xf32>
    %38 = arith.mulf %4, %6 : vector<1x16x16xf32>
    %cst_42 = arith.constant dense<0.000000e+00> : vector<1x16xf32>
    %39 = vector.multi_reduction <add>, %38, %cst_42 [2] : vector<1x16x16xf32> to vector<1x16xf32>
    %40 = vector.shape_cast %39 : vector<1x16xf32> to vector<1x16x1xf32>
    %cst_43 = arith.constant dense<0.000000e+00> : vector<1x1xf32>
    %41 = vector.multi_reduction <add>, %40, %cst_43 [1] : vector<1x16x1xf32> to vector<1x1xf32>
    %42 = vector.shape_cast %41 : vector<1x1xf32> to vector<1x1x1xf32>
    %43 = arith.addf %37, %42 : vector<1x1x1xf32>
    %c0_44 = arith.constant 0 : index
    %c0_45 = arith.constant 0 : index
    %c0_46 = arith.constant 0 : index
    %44 = vector.load %arg9[%c0_44, %c0_45, %c0_46] : memref<1x1x1xf32, #tpu.memory_space<vmem>>, vector<1x1x1xf32>
    tpu.vector_store %arg9[%c0_44, %c0_45, %c0_46], %43 {strides = array<i32>} : memref<1x1x1xf32, #tpu.memory_space<vmem>>, vector<1x1x1xf32>,
    %c0_i32_47 = arith.constant 0 : i32
    %45 = arith.cmpi eq, %arg1, %c0_i32_47 : i32
    %46 = arith.extui %45 : i1 to i32
    %c0_i32_48 = arith.constant 0 : i32
    %47 = arith.cmpi ne, %46, %c0_i32_48 : i32
    scf.if %47 {
      %c0_49 = arith.constant 0 : index
      %c0_50 = arith.constant 0 : index
      %c0_51 = arith.constant 0 : index
      %48 = vector.load %arg5[%c0_49, %c0_50, %c0_51] : memref<1x1x1xf32, #tpu.memory_space<vmem>>, vector<1x1x1xf32>
      %c0_52 = arith.constant 0 : index
      %c0_53 = arith.constant 0 : index
      %c0_54 = arith.constant 0 : index
      %49 = vector.load %arg6[%c0_52, %c0_53, %c0_54] : memref<1x1x1xf32, #tpu.memory_space<vmem>>, vector<1x1x1xf32>
      %c0_55 = arith.constant 0 : index
      %c0_56 = arith.constant 0 : index
      %c0_57 = arith.constant 0 : index
      %50 = vector.load %arg9[%c0_55, %c0_56, %c0_57] : memref<1x1x1xf32, #tpu.memory_space<vmem>>, vector<1x1x1xf32>
      %51 = arith.mulf %48, %49 : vector<1x1x1xf32>
      %cst_58 = arith.constant 3.906250e-03 : f32
      %52 = vector.broadcast %cst_58 : f32 to vector<1x1x1xf32>
      %53 = arith.mulf %51, %52 : vector<1x1x1xf32>
      %54 = arith.subf %50, %53 : vector<1x1x1xf32>
      %cst_59 = arith.constant dense<0.000000e+00> : vector<1x1xf32>
      %55 = vector.multi_reduction <add>, %54, %cst_59 [0] : vector<1x1x1xf32> to vector<1x1xf32>
      %56 = vector.shape_cast %55 : vector<1x1xf32> to vector<1x1x1xf32>
      %c0_60 = arith.constant 0 : index
      %c0_61 = arith.constant 0 : index
      %c0_62 = arith.constant 0 : index
      %57 = vector.load %arg7[%c0_60, %c0_61, %c0_62] : memref<1x1x1xf32, #tpu.memory_space<vmem>>, vector<1x1x1xf32>
      %58 = arith.mulf %48, %48 : vector<1x1x1xf32>
      %cst_63 = arith.constant 3.906250e-03 : f32
      %59 = vector.broadcast %cst_63 : f32 to vector<1x1x1xf32>
      %60 = arith.mulf %58, %59 : vector<1x1x1xf32>
      %61 = arith.subf %57, %60 : vector<1x1x1xf32>
      %cst_64 = arith.constant dense<0.000000e+00> : vector<1x1xf32>
      %62 = vector.multi_reduction <add>, %61, %cst_64 [0] : vector<1x1x1xf32> to vector<1x1xf32>
      %63 = vector.shape_cast %62 : vector<1x1xf32> to vector<1x1x1xf32>
      %cst_65 = arith.constant 0.000000e+00 : f32
      %64 = vector.broadcast %cst_65 : f32 to vector<1x1x1xf32>
      %65 = arith.maximumf %63, %64 : vector<1x1x1xf32>
      %c0_66 = arith.constant 0 : index
      %c0_67 = arith.constant 0 : index
      %c0_68 = arith.constant 0 : index
      %66 = vector.load %arg8[%c0_66, %c0_67, %c0_68] : memref<1x1x1xf32, #tpu.memory_space<vmem>>, vector<1x1x1xf32>
      %67 = arith.mulf %49, %49 : vector<1x1x1xf32>
      %cst_69 = arith.constant 3.906250e-03 : f32
      %68 = vector.broadcast %cst_69 : f32 to vector<1x1x1xf32>
      %69 = arith.mulf %67, %68 : vector<1x1x1xf32>
      %70 = arith.subf %66, %69 : vector<1x1x1xf32>
      %cst_70 = arith.constant dense<0.000000e+00> : vector<1x1xf32>
      %71 = vector.multi_reduction <add>, %70, %cst_70 [0] : vector<1x1x1xf32> to vector<1x1xf32>
      %72 = vector.shape_cast %71 : vector<1x1xf32> to vector<1x1x1xf32>
      %cst_71 = arith.constant 0.000000e+00 : f32
      %73 = vector.broadcast %cst_71 : f32 to vector<1x1x1xf32>
      %74 = arith.maximumf %72, %73 : vector<1x1x1xf32>
      %75 = math.sqrt %65 : vector<1x1x1xf32>
      %76 = math.sqrt %74 : vector<1x1x1xf32>
      %77 = arith.mulf %75, %76 : vector<1x1x1xf32>
      %cst_72 = arith.constant 9.99999993E-9 : f32
      %78 = vector.broadcast %cst_72 : f32 to vector<1x1x1xf32>
      %79 = arith.addf %77, %78 : vector<1x1x1xf32>
      %80 = arith.divf %56, %79 : vector<1x1x1xf32>
      %81 = arith.mulf %80, %80 : vector<1x1x1xf32>
      %c0_73 = arith.constant 0 : index
      %c0_74 = arith.constant 0 : index
      %c0_75 = arith.constant 0 : index
      %82 = vector.load %arg4[%c0_73, %c0_74, %c0_75] : memref<1x1x1xf32, #tpu.memory_space<vmem>>, vector<1x1x1xf32>
      tpu.vector_store %arg4[%c0_73, %c0_74, %c0_75], %81 {strides = array<i32>} : memref<1x1x1xf32, #tpu.memory_space<vmem>>, vector<1x1x1xf32>,
    } else {
    }
    return
  }
  func.func @transform_0(%arg0: i32, %arg1: i32) -> (i32, i32, i32, i32) {
    %c0_i32 = arith.constant 0 : i32
    %c0_i32_0 = arith.constant 0 : i32
    %c0_i32_1 = arith.constant 0 : i32
    return %arg0, %c0_i32, %arg1, %c0_i32_0 : i32, i32, i32, i32
  }
  func.func @transform_1(%arg0: i32, %arg1: i32) -> (i32, i32, i32, i32) {
    %c0_i32 = arith.constant 0 : i32
    %c0_i32_0 = arith.constant 0 : i32
    %c0_i32_1 = arith.constant 0 : i32
    return %arg0, %c0_i32, %arg1, %c0_i32_0 : i32, i32, i32, i32
  }
  func.func @transform_2(%arg0: i32, %arg1: i32) -> (i32, i32, i32) {
    %c0_i32 = arith.constant 0 : i32
    %c0_i32_0 = arith.constant 0 : i32
    %c0_i32_1 = arith.constant 0 : i32
    return %arg0, %c0_i32, %c0_i32_0 : i32, i32, i32
  }
}

</mosaic_0001>

<llo_original>
// kernel: tpu_custom_call.1
$region0: #{tpu_custom_call.1}
  #allocation0 [shape = 'u32[]', space=smem, size = 0x4, offset = 0x4, fixed_abs, tag = 'smem constant byte address 0x4 - core index']
  #allocation1 [shape = 'u32[72,128]{1,0:T(1,128)}', space=vmem, size = 0x9000, scoped, tag = 'internal scratch']
  #allocation2 [shape = 'f32[1,1,1]{2,1,0:T(1,128)}', space=vmem, size = 0x200, scoped, tag = 'scratch operand']
  #allocation3 [shape = 'f32[1,1,1]{2,1,0:T(1,128)}', space=vmem, size = 0x200, scoped, tag = 'scratch operand']
  #allocation4 [shape = 'f32[1,1,1]{2,1,0:T(1,128)}', space=vmem, size = 0x200, scoped, tag = 'scratch operand']
  #allocation5 [shape = 'f32[1,1,1]{2,1,0:T(1,128)}', space=vmem, size = 0x200, scoped, tag = 'scratch operand']
  #allocation6 [shape = 'f32[1,1,1]{2,1,0:T(1,128)}', space=vmem, size = 0x200, scoped, tag = 'scratch operand']
  %s0 = inlined_call_operand.hbm [shape: f32[2,1,16,16], index: 0, kind: input, shape index: {}]
  %s1 = inlined_call_operand.hbm [shape: f32[2,1,16,16], index: 1, kind: input, shape index: {}]
  %s2 = inlined_call_operand.vmem [shape: f32[2,1,1], index: 2, kind: output, shape index: {}]
  %s3 = sld [smem:[#allocation0]]
  $region57: #{tpu_custom_call.1} parent=0
    _
  %s5 = ssub.s32 1, %s3
  %s6 = scalar_select 0, %s5, %s3
  $region1: #{tpu_custom_call.1} parent=0
    #allocation7 [shape = 'u8[16384]{0}', space=vmem, size = 0x4000, scoped, tag = 'input window, operand 0']
    #allocation8 [shape = 's32[2]{0}', space=sflag, size = 0x8, scoped, tag = 'scoped memory for tpu_custom_call.1']
    #allocation9 [shape = 'u8[16384]{0}', space=vmem, size = 0x4000, scoped, tag = 'input window, operand 1']
    #allocation10 [shape = 's32[2]{0}', space=sflag, size = 0x8, scoped, tag = 'scoped memory for tpu_custom_call.1']
    %7 = vsyncpa [#allocation8], 0
    %s8 = scalar_lea.sflag [#allocation8], 1
    %9 = vsyncpa %s8, 0
    %10 = vsyncpa [#allocation10], 0
    %s11 = scalar_lea.sflag [#allocation10], 1
    %12 = vsyncpa %s11, 0
    loop: start=0, step=1, limit=4
    $region2: #{tpu_custom_call.1} parent=1 // loop_pre_header
      _
    $region3: #{tpu_custom_call.1} parent=1 // loop_header
      %s14 = sphi 0, %s18
      %p15 = scmp.ge.s32.totalorder %s14, 4
      %s21 = sphi 0, %s33
      %s22 = sphi 0, %s29
      %s23 = sphi 0, %s21
      %s24 = sphi 0, %s22
      %s25 = sphi 0, %s23
      %s26 = sphi 0, %s24
      %s38 = sphi 0, %s40
      %s41 = sphi 0, %s38
      %s42 = sphi 0, %s41
      %s58 = sphi 0, %s42
      %s66 = sphi 0, %s68
      %s69 = sphi 0, %s66
      %s70 = sphi 0, %s69
      %s86 = sphi 0, %s70
      %s92 = sphi 0, %s94
      %s95 = sphi 0, %s92
      %s96 = sphi 0, %s95
      %s112 = sphi 0, %s96
    $region4: #{tpu_custom_call.1} parent=1 // loop_header_branch
      %17 = sbr.rel (%p15) target = $region8
    $region5: #{tpu_custom_call.1} parent=1 // loop_body
      %s19 = ssub.s32 %s14, 1
      %s20 = ssub.s32 %s14, 2
      %s27 = sadd.s32 1, %s22
      %p28 = scmp.ge.s32.totalorder %s27, 1
      %s29 = scalar_select %p28, 0, %s27
      %s30 = sadd.s32 1, %s21
      %s31 = scalar_select %p28, %s30, %s21
      %p32 = scmp.ge.s32.totalorder %s31, 2
      %s33 = scalar_select %p32, 0, %s31
      %s34 = ssub.s32 %s21, %s33
      %s35 = ssub.s32 %s22, %s29
      %s36 = sor.u32 %s34, %s35
      %p37 = scmp.eq.s32.totalorder %s36, 0
      %s39 = sadd.s32 %s38, 1
      %s40 = scalar_select %p37, %s38, %s39
      %p43 = pneg %p37
      %p44 = scmp.eq.s32.totalorder %s14, 1
      %p45 = por %p43, %p44
      %p46 = scmp.ne.s32.totalorder %s38, %s41
      %p47 = scmp.eq.s32.totalorder %s14, 0
      %p48 = por %p46, %p47
      %p49 = scmp.ne.s32.totalorder %s38, %s41
      %p50 = scmp.eq.s32.totalorder %s19, 1
      %p51 = por %p49, %p50
      %p52 = scmp.ne.s32.totalorder %s41, %s42
      %p53 = scmp.eq.s32.totalorder %s19, 0
      %p54 = por %p52, %p53
      %p55 = scmp.ne.s32.totalorder %s41, %s42
      %p56 = scmp.eq.s32.totalorder %s20, 1
      %p57 = por %p55, %p56
      %p59 = scmp.ne.s32.totalorder %s42, %s58
      %p60 = scmp.eq.s32.totalorder %s20, 0
      %p61 = por %p59, %p60
      %s62 = ssub.s32 %s21, %s33
      %s63 = ssub.s32 %s22, %s29
      %s64 = sor.u32 %s62, %s63
      %p65 = scmp.eq.s32.totalorder %s64, 0
      %s67 = sadd.s32 %s66, 1
      %s68 = scalar_select %p65, %s66, %s67
      %p71 = pneg %p65
      %p72 = scmp.eq.s32.totalorder %s14, 1
      %p73 = por %p71, %p72
      %p74 = scmp.ne.s32.totalorder %s66, %s69
      %p75 = scmp.eq.s32.totalorder %s14, 0
      %p76 = por %p74, %p75
      %p77 = scmp.ne.s32.totalorder %s66, %s69
      %p78 = scmp.eq.s32.totalorder %s19, 1
      %p79 = por %p77, %p78
      %p80 = scmp.ne.s32.totalorder %s69, %s70
      %p81 = scmp.eq.s32.totalorder %s19, 0
      %p82 = por %p80, %p81
      %p83 = scmp.ne.s32.totalorder %s69, %s70
      %p84 = scmp.eq.s32.totalorder %s20, 1
      %p85 = por %p83, %p84
      %p87 = scmp.ne.s32.totalorder %s70, %s86
      %p88 = scmp.eq.s32.totalorder %s20, 0
      %p89 = por %p87, %p88
      %s90 = ssub.s32 %s21, %s33
      %p91 = scmp.eq.s32.totalorder %s90, 0
      %s93 = sadd.s32 %s92, 1
      %s94 = scalar_select %p91, %s92, %s93
      %p97 = pneg %p91
      %p98 = scmp.eq.s32.totalorder %s14, 1
      %p99 = por %p97, %p98
      %p100 = scmp.ne.s32.totalorder %s92, %s95
      %p101 = scmp.eq.s32.totalorder %s14, 0
      %p102 = por %p100, %p101
      %p103 = scmp.ne.s32.totalorder %s92, %s95
      %p104 = scmp.eq.s32.totalorder %s19, 1
      %p105 = por %p103, %p104
      %p106 = scmp.ne.s32.totalorder %s95, %s96
      %p107 = scmp.eq.s32.totalorder %s19, 0
      %p108 = por %p106, %p107
      %p109 = scmp.ne.s32.totalorder %s95, %s96
      %p110 = scmp.eq.s32.totalorder %s20, 1
      %p111 = por %p109, %p110
      %p113 = scmp.ne.s32.totalorder %s96, %s112
      %p114 = scmp.eq.s32.totalorder %s20, 0
      %p115 = por %p113, %p114
      %p116 = scmp.le.s32.totalorder 1, %s14
      %p117 = scmp.lt.s32.totalorder %s14, 3
      %p118 = pnand %p116, %p117
      %p119 = pneg %p118
      // Predicated region
      $region9: #{tpu_custom_call.1} parent=5 // pred_check
        _
      $region10: #{tpu_custom_call.1} parent=5 // pred_check_branch
        %121 = sbr.rel (%p118) target = $region12
      $region11: #{tpu_custom_call.1} parent=5 // pred_region
        %s122 = ssub.s32 %s14, 1
      $region12: #{tpu_custom_call.1} parent=5 // pred_fallthru
        _
      %p123 = scmp.lt.s32.totalorder %s14, 2
      // Predicated region
      $region13: #{tpu_custom_call.1} parent=5 // pred_check
        %p124 = pneg %p123
      $region14: #{tpu_custom_call.1} parent=5 // pred_check_branch
        %126 = sbr.rel (%p124) target = $region16
      $region15: #{tpu_custom_call.1} parent=5 // pred_region
        // Predicated region
        $region17: #{tpu_custom_call.1} parent=15 // pred_check
          %p127 = pneg %p48
        $region18: #{tpu_custom_call.1} parent=15 // pred_check_branch
          %129 = sbr.rel (%p127) target = $region20
        $region19: #{tpu_custom_call.1} parent=15 // pred_region
          %s130 = sand.u32 %s38, 1
          %s131 = scalar_lea.sflag [#allocation8], %s130
          %s132 = sand.u32 %s38, 1
          %s133 = smul.addr %s132, 16
          %s134 = scalar_lea.vmem [#allocation7], %s133
          %s135 = smul.u32 2, %s22
          %137 = vsyncadd %s131, 0
          %s138 = smul.addr %s21, 2
          %s139 = sadd.s32 %s135, %s138
          %s140 = smul.addr %s139, 8
          %s141 = scalar_lea.hbm %s0, %s140
          %s142 = sshll.u32 %s141, 4
          %s143 = int_to_ptr.hbm [resolvable:$true] %s142
          %s144 = sshll.u32 %s134, 4
          %s145 = int_to_ptr.vmem [resolvable:$true] %s144
          %150 = dma.hbm_to_vmem [thread:$0]  %s143, 256, %s145, %s131, 128, 128, 8
        $region20: #{tpu_custom_call.1} parent=15 // pred_fallthru
          _
        // Predicated region
        $region21: #{tpu_custom_call.1} parent=15 // pred_check
          %p151 = pneg %p76
        $region22: #{tpu_custom_call.1} parent=15 // pred_check_branch
          %153 = sbr.rel (%p151) target = $region24
        $region23: #{tpu_custom_call.1} parent=15 // pred_region
          %s154 = sand.u32 %s66, 1
          %s155 = scalar_lea.sflag [#allocation10], %s154
          %s156 = sand.u32 %s66, 1
          %s157 = smul.addr %s156, 16
          %s158 = scalar_lea.vmem [#allocation9], %s157
          %s159 = smul.u32 2, %s22
          %161 = vsyncadd %s155, 0
          %s162 = smul.addr %s21, 2
          %s163 = sadd.s32 %s159, %s162
          %s164 = smul.addr %s163, 8
          %s165 = scalar_lea.hbm %s1, %s164
          %s166 = sshll.u32 %s165, 4
          %s167 = int_to_ptr.hbm [resolvable:$true] %s166
          %s168 = sshll.u32 %s158, 4
          %s169 = int_to_ptr.vmem [resolvable:$true] %s168
          %174 = dma.hbm_to_vmem [thread:$0]  %s167, 256, %s169, %s155, 128, 128, 8
        $region24: #{tpu_custom_call.1} parent=15 // pred_fallthru
          _
      $region16: #{tpu_custom_call.1} parent=5 // pred_fallthru
        _
      %p175 = scmp.le.s32.totalorder 1, %s14
      %p176 = scmp.lt.s32.totalorder %s14, 3
      %p177 = pnand %p175, %p176
      %p178 = pneg %p177
      // Predicated region
      $region25: #{tpu_custom_call.1} parent=5 // pred_check
        _
      $region26: #{tpu_custom_call.1} parent=5 // pred_check_branch
        %180 = sbr.rel (%p177) target = $region28
      $region27: #{tpu_custom_call.1} parent=5 // pred_region
        %s181 = ssub.s32 %s14, 1
        %s182 = sand.u32 %s41, 1
        %s183 = scalar_lea.sflag [#allocation8], %s182
        %s184 = sand.u32 %s41, 1
        %s185 = smul.addr %s184, 16
        %s186 = scalar_lea.vmem [#allocation7], %s185
        // Predicated region
        $region29: #{tpu_custom_call.1} parent=27 // pred_check
          %p187 = pneg %p54
        $region30: #{tpu_custom_call.1} parent=27 // pred_check_branch
          %189 = sbr.rel (%p187) target = $region32
        $region31: #{tpu_custom_call.1} parent=27 // pred_region
          %191 = dma.done %s183, 256
        $region32: #{tpu_custom_call.1} parent=27 // pred_fallthru
          _
        %s192 = sand.u32 %s69, 1
        %s193 = scalar_lea.sflag [#allocation10], %s192
        %s194 = sand.u32 %s69, 1
        %s195 = smul.addr %s194, 16
        %s196 = scalar_lea.vmem [#allocation9], %s195
        // Predicated region
        $region33: #{tpu_custom_call.1} parent=27 // pred_check
          %p197 = pneg %p82
        $region34: #{tpu_custom_call.1} parent=27 // pred_check_branch
          %199 = sbr.rel (%p197) target = $region36
        $region35: #{tpu_custom_call.1} parent=27 // pred_region
          %201 = dma.done %s193, 256
        $region36: #{tpu_custom_call.1} parent=27 // pred_fallthru
          _
        %s202 = sand.u32 %s41, 1
        %s203 = scalar_lea.sflag [#allocation8], %s202
        %s204 = sand.u32 %s41, 1
        %s205 = smul.addr %s204, 16
        %s206 = scalar_lea.vmem [#allocation7], %s205
        %p207 = pneg %p54
        %p208 = pneg %p51
        %s209 = sand.u32 %s69, 1
        %s210 = scalar_lea.sflag [#allocation10], %s209
        %s211 = sand.u32 %s69, 1
        %s212 = smul.addr %s211, 16
        %s213 = scalar_lea.vmem [#allocation9], %s212
        %p214 = pneg %p82
        %p215 = pneg %p79
        %p216 = pneg %p108
        %p217 = pneg %p105
        %p218 = scmp.lt.s32.totalorder %s23, 1
        %s219 = scalar_select %p218, %s23, 1
        %s220 = scalar_lea.vmem %s2, %s219
        %s221 = smul.u32 2, %s24
        %s222 = smul.u32 2, %s24
        %p223 = scmp.lt.s32.totalorder %s23, 1
        %s224 = scalar_select %p223, %s23, 1
        %s225 = scalar_lea.vmem %s2, %s224
        %p226 = scmp.eq.s32.totalorder %s24, 0
        // Predicated region
        $region37: #{tpu_custom_call.1} parent=27 // pred_check
          %p227 = pneg %p226
        $region38: #{tpu_custom_call.1} parent=27 // pred_check_branch
          %229 = sbr.rel (%p227) target = $region40
        $region39: #{tpu_custom_call.1} parent=27 // pred_region
          %vm230 = vcmask 0
          %231 = vst.msk [vmem:[#allocation2] sm:$0x1] %vm230, 0.0
          %232 = vst.msk [vmem:[#allocation3] sm:$0x1] %vm230, 0.0
          %233 = vst.msk [vmem:[#allocation4] sm:$0x1] %vm230, 0.0
          %234 = vst.msk [vmem:[#allocation5] sm:$0x1] %vm230, 0.0
          %235 = vst.msk [vmem:[#allocation6] sm:$0x1] %vm230, 0.0
        $region40: #{tpu_custom_call.1} parent=27 // pred_fallthru
          _
        %v236 = vld [vmem:[%s186] sm:$0xff]
        %v237 = vld [vmem:[%s186 + $0x8] sm:$0xff]
        %v238 = vld [vmem:[%s196] sm:$0xff]
        %v239 = vld [vmem:[%s196 + $0x8] sm:$0xff]
        %v240 = vld [vmem:[#allocation2] sm:$0x1]
        %vm241 = vcmask 130048
        %v242 = vsel %vm241, %v236, 0.0
        %243 = vadd.xlane.f32.xlu0 %v242
        %v244 = vpop.xlane.xlu0 %243
        %v245 = vsel %vm241, %v237, 0.0
        %246 = vadd.xlane.f32.xlu0 %v245
        %v247 = vpop.xlane.xlu0 %246
        %v248 = vadd.f32 %v244, %v247
        %v249 = vrot.slane %v248, 4
        %v250 = vadd.f32 %v248, %v249
        %v251 = vrot.slane %v250, 2
        %v252 = vadd.f32 %v250, %v251
        %v253 = vrot.slane %v252, 1
        %v254 = vadd.f32 %v252, %v253
        %v255 = vadd.f32 %v240, %v254
        %vm256 = vcmask 0
        %257 = vst.msk [vmem:[#allocation2] sm:$0x1] %vm256, %v255
        %v258 = vld [vmem:[#allocation3] sm:$0x1]
        %v259 = vsel %vm241, %v238, 0.0
        %260 = vadd.xlane.f32.xlu0 %v259
        %v261 = vpop.xlane.xlu0 %260
        %v262 = vsel %vm241, %v239, 0.0
        %263 = vadd.xlane.f32.xlu0 %v262
        %v264 = vpop.xlane.xlu0 %263
        %v265 = vadd.f32 %v261, %v264
        %v266 = vrot.slane %v265, 4
        %v267 = vadd.f32 %v265, %v266
        %v268 = vrot.slane %v267, 2
        %v269 = vadd.f32 %v267, %v268
        %v270 = vrot.slane %v269, 1
        %v271 = vadd.f32 %v269, %v270
        %v272 = vadd.f32 %v258, %v271
        %273 = vst.msk [vmem:[#allocation3] sm:$0x1] %vm256, %v272
        %v274 = vld [vmem:[#allocation4] sm:$0x1]
        %v275 = vmul.f32 %v236, %v236
        %v276 = vmul.f32 %v237, %v237
        %v277 = vsel %vm241, %v275, 0.0
        %278 = vadd.xlane.f32.xlu0 %v277
        %v279 = vpop.xlane.xlu0 %278
        %v280 = vsel %vm241, %v276, 0.0
        %281 = vadd.xlane.f32.xlu0 %v280
        %v282 = vpop.xlane.xlu0 %281
        %v283 = vadd.f32 %v279, %v282
        %v284 = vrot.slane %v283, 4
        %v285 = vadd.f32 %v283, %v284
        %v286 = vrot.slane %v285, 2
        %v287 = vadd.f32 %v285, %v286
        %v288 = vrot.slane %v287, 1
        %v289 = vadd.f32 %v287, %v288
        %v290 = vadd.f32 %v274, %v289
        %291 = vst.msk [vmem:[#allocation4] sm:$0x1] %vm256, %v290
        %v292 = vld [vmem:[#allocation5] sm:$0x1]
        %v293 = vmul.f32 %v238, %v238
        %v294 = vmul.f32 %v239, %v239
        %v295 = vsel %vm241, %v293, 0.0
        %296 = vadd.xlane.f32.xlu0 %v295
        %v297 = vpop.xlane.xlu0 %296
        %v298 = vsel %vm241, %v294, 0.0
        %299 = vadd.xlane.f32.xlu0 %v298
        %v300 = vpop.xlane.xlu0 %299
        %v301 = vadd.f32 %v297, %v300
        %v302 = vrot.slane %v301, 4
        %v303 = vadd.f32 %v301, %v302
        %v304 = vrot.slane %v303, 2
        %v305 = vadd.f32 %v303, %v304
        %v306 = vrot.slane %v305, 1
        %v307 = vadd.f32 %v305, %v306
        %v308 = vadd.f32 %v292, %v307
        %309 = vst.msk [vmem:[#allocation5] sm:$0x1] %vm256, %v308
        %v310 = vld [vmem:[#allocation6] sm:$0x1]
        %v311 = vmul.f32 %v236, %v238
        %v312 = vmul.f32 %v237, %v239
        %v313 = vsel %vm241, %v311, 0.0
        %314 = vadd.xlane.f32.xlu0 %v313
        %v315 = vpop.xlane.xlu0 %314
        %v316 = vsel %vm241, %v312, 0.0
        %317 = vadd.xlane.f32.xlu0 %v316
        %v318 = vpop.xlane.xlu0 %317
        %v319 = vadd.f32 %v315, %v318
        %v320 = vrot.slane %v319, 4
        %v321 = vadd.f32 %v319, %v320
        %v322 = vrot.slane %v321, 2
        %v323 = vadd.f32 %v321, %v322
        %v324 = vrot.slane %v323, 1
        %v325 = vadd.f32 %v323, %v324
        %v326 = vadd.f32 %v310, %v325
        %327 = vst.msk [vmem:[#allocation6] sm:$0x1] %vm256, %v326
        // Predicated region
        $region41: #{tpu_custom_call.1} parent=27 // pred_check
          %p328 = pneg %p226
        $region42: #{tpu_custom_call.1} parent=27 // pred_check_branch
          %330 = sbr.rel (%p328) target = $region44
        $region43: #{tpu_custom_call.1} parent=27 // pred_region
          %v331 = vld [vmem:[#allocation2] sm:$0x1]
          %v332 = vld [vmem:[#allocation3] sm:$0x1]
          %v333 = vld [vmem:[#allocation6] sm:$0x1]
          %v334 = vmul.f32 %v331, %v332
          %v335 = vmul.f32 %v334, 0.00390625
          %v336 = vsub.f32 %v333, %v335
          %v337 = vadd.f32 %v336, 0.0
          %v338 = vld [vmem:[#allocation4] sm:$0x1]
          %v339 = vmul.f32 %v331, %v331
          %v340 = vmul.f32 %v339, 0.00390625
          %v341 = vsub.f32 %v338, %v340
          %v342 = vadd.f32 %v341, 0.0
          %v343 = vmax.f32 %v342, 0.0
          %v344 = vld [vmem:[#allocation5] sm:$0x1]
          %v345 = vmul.f32 %v332, %v332
          %v346 = vmul.f32 %v345, 0.00390625
          %v347 = vsub.f32 %v344, %v346
          %v348 = vadd.f32 %v347, 0.0
          %v349 = vmax.f32 %v348, 0.0
          %v350 = vrsqrt.pop %v343
          %v351 = vmul.f32 %v350, %v343
          %v352 = vmul.f32 %v351, %v350
          %v353 = vmul.f32 0.5, %v352
          %v354 = vsub.f32 1.5, %v353
          %v355 = vmul.f32 %v350, %v354
          %v356 = vmul.f32 %v343, %v355
          %vm357 = vcmp.eq.f32.partialorder %v343, inf
          %v358 = vsel %vm357, %v343, %v356
          %vm359 = vcmp.eq.f32.partialorder %v343, 0.0
          %v360 = vand.u32 %v343, 2147483648
          %v361 = vsel %vm359, %v360, %v358
          %v362 = vrsqrt.pop %v349
          %v363 = vmul.f32 %v362, %v349
          %v364 = vmul.f32 %v363, %v362
          %v365 = vmul.f32 0.5, %v364
          %v366 = vsub.f32 1.5, %v365
          %v367 = vmul.f32 %v362, %v366
          %v368 = vmul.f32 %v349, %v367
          %vm369 = vcmp.eq.f32.partialorder %v349, inf
          %v370 = vsel %vm369, %v349, %v368
          %vm371 = vcmp.eq.f32.partialorder %v349, 0.0
          %v372 = vand.u32 %v349, 2147483648
          %v373 = vsel %vm371, %v372, %v370
          %v374 = vmul.f32 %v361, %v373
          %v375 = vadd.f32 %v374, 1e-08
          %v376 = vrcp.pop %v375
          %v377 = vmul.f32 %v375, %v376
          %v378 = vsub.f32 1.0, %v377
          %v379 = vmul.f32 %v376, %v378
          %v380 = vadd.f32 %v376, %v379
          %vm381 = vweird.f32 %v375
          %vm382 = vweird.f32 %v376
          %vm383 = vmor %vm381, %vm382
          %v384 = vsel %vm383, %v376, %v380
          %v385 = vand.u32 2147483647, %v375
          %vm386 = vcmp.eq.f32.partialorder %v385, 8.507059e+37
          %v387 = vand.u32 %v375, 2147483648
          %v388 = vor.u32 1.1754944e-38, %v387
          %v389 = vsel %vm386, %v388, %v384
          %v390 = vmul.f32 %v337, %v389
          %v391 = vmul.f32 %v390, %v390
          %392 = vst.msk [vmem:[%s225] sm:$0x1] %vm256, %v391
        $region44: #{tpu_custom_call.1} parent=27 // pred_fallthru
          _
        %p393 = scmp.lt.s32.totalorder %s23, 1
        %s394 = scalar_select %p393, %s23, 1
        %s395 = scalar_lea.vmem %s2, %s394
        // Predicated region
        $region45: #{tpu_custom_call.1} parent=27 // pred_check
          %p396 = pneg %p105
        $region46: #{tpu_custom_call.1} parent=27 // pred_check_branch
          %398 = sbr.rel (%p396) target = $region48
        $region47: #{tpu_custom_call.1} parent=27 // pred_region
          _
        $region48: #{tpu_custom_call.1} parent=27 // pred_fallthru
          _
      $region28: #{tpu_custom_call.1} parent=5 // pred_fallthru
        _
      %p399 = scmp.le.s32.totalorder 2, %s14
      // Predicated region
      $region49: #{tpu_custom_call.1} parent=5 // pred_check
        %p400 = pneg %p399
      $region50: #{tpu_custom_call.1} parent=5 // pred_check_branch
        %402 = sbr.rel (%p400) target = $region52
      $region51: #{tpu_custom_call.1} parent=5 // pred_region
        %s403 = ssub.s32 %s14, 2
        // Predicated region
        $region53: #{tpu_custom_call.1} parent=51 // pred_check
          %p404 = pneg %p111
        $region54: #{tpu_custom_call.1} parent=51 // pred_check_branch
          %406 = sbr.rel (%p404) target = $region56
        $region55: #{tpu_custom_call.1} parent=51 // pred_region
          %p407 = scmp.lt.s32.totalorder %s25, 1
          %s408 = scalar_select %p407, %s25, 1
          %s409 = scalar_lea.vmem %s2, %s408
        $region56: #{tpu_custom_call.1} parent=51 // pred_fallthru
          _
      $region52: #{tpu_custom_call.1} parent=5 // pred_fallthru
        _
    $region6: #{tpu_custom_call.1} parent=1 // loop_footer
      %s18 = sadd.s32 1, %s14
    $region7: #{tpu_custom_call.1} parent=1 // loop_footer_branch
      %13 = sbr.rel target = $region3
    $region8: #{tpu_custom_call.1} parent=1 // loop_exit
      _
    %410 = vsyncpa [#allocation8], 1
    %s411 = scalar_lea.sflag [#allocation8], 1
    %412 = vsyncpa %s411, 1
    %413 = vsyncpa [#allocation10], 1
    %s414 = scalar_lea.sflag [#allocation10], 1
    %415 = vsyncpa %s414, 1

</llo_original>
